<compile_context>
chip_gen: v7x
topology: tpu7x:2x2x1
jax: 0.10.0
libtpu: 0.0.40
codegen_flags: <defaults>
</compile_context>

<pallas_src>
import jax
import jax.numpy as jnp
from jax.experimental import pallas as pl
from jax.experimental.pallas import tpu as pltpu


def _round_up(x, m):
    return (x + m - 1) // m * m


def _cdiv(a, b):
    return (a + b - 1) // b


# ---------------------------------------------------------------------------
# Kernel: fused 4-layer MLP (Linear->ReLU x3 -> Linear) for one batch tile.
# All Q heads are folded into the feature/lane dimension of the weights.
# ---------------------------------------------------------------------------
def _fused_mlp_kernel(x_ref,
                      w1_ref, b1_ref,
                      w2_ref, b2_ref,
                      w3_ref, b3_ref,
                      w4_ref, b4_ref,
                      o_ref):
    x = x_ref[...]                                                    # [TB, S]
    h = jnp.dot(x, w1_ref[...], preferred_element_type=jnp.float32) + b1_ref[...]
    h = jnp.maximum(h, 0.0)                                           # [TB, H*hd]
    h = jnp.dot(h, w2_ref[...], preferred_element_type=jnp.float32) + b2_ref[...]
    h = jnp.maximum(h, 0.0)                                           # [TB, H*hd2]
    h = jnp.dot(h, w3_ref[...], preferred_element_type=jnp.float32) + b3_ref[...]
    h = jnp.maximum(h, 0.0)                                           # [TB, H*hd4]
    out = jnp.dot(h, w4_ref[...], preferred_element_type=jnp.float32) + b4_ref[...]
    o_ref[...] = out.astype(o_ref.dtype)                              # [TB, A_PAD]


# ---------------------------------------------------------------------------
# Wrapper: one pallas_call over grid = (batch_tiles,). Weights are resident
# (constant index_map); only the x tile / output tile move per grid step.
# ---------------------------------------------------------------------------
def fused_q_heads(x, params, *, tile_cap=2048):
    """x: [B, state_size] f32. Returns padded Q slab [B_pad, A_PAD] (f32)."""
    B, state_size = x.shape
    w1, b1 = params["w1"], params["b1"]
    w2, b2 = params["w2"], params["b2"]
    w3, b3 = params["w3"], params["b3"]
    w4, b4 = params["w4"], params["b4"]
    a_pad = w4.shape[1]

    # Balanced batch tiling: pad to a sublane multiple (8), cap tile rows, and
    # keep padding <= 7 rows (no round-up-to-tile blowup).
    b8 = _round_up(B, 8)
    n_tiles = _cdiv(b8, tile_cap)
    tb = _round_up(_cdiv(b8, n_tiles), 8)
    b_pad = n_tiles * tb
    if b_pad != B:
        x = jnp.pad(x, ((0, b_pad - B), (0, 0)))

    def _x_map(i):
        return (i, 0)

    def _w_map(i):          # constant -> weights stay VMEM-resident
        return (0, 0)

    in_specs = [
        pl.BlockSpec((tb, state_size), _x_map),   # x tile
        pl.BlockSpec(w1.shape, _w_map),           # W1_all   [S, H*hd]
        pl.BlockSpec(b1.shape, _w_map),           # b1_all   [1, H*hd]
        pl.BlockSpec(w2.shape, _w_map),           # W2_bd    [H*hd, H*hd2]
        pl.BlockSpec(b2.shape, _w_map),           # b2_all   [1, H*hd2]
        pl.BlockSpec(w3.shape, _w_map),           # W3_bd    [H*hd2, H*hd4]
        pl.BlockSpec(b3.shape, _w_map),           # b3_all   [1, H*hd4]
        pl.BlockSpec(w4.shape, _w_map),           # W4_pack  [H*hd4, A_PAD]
        pl.BlockSpec(b4.shape, _w_map),           # b4_pack  [1, A_PAD] (zeros)
    ]
    out_specs = pl.BlockSpec((tb, a_pad), _x_map)

    return pl.pallas_call(
        _fused_mlp_kernel,
        out_shape=jax.ShapeDtypeStruct((b_pad, a_pad), jnp.float32),
        grid=(n_tiles,),
        in_specs=in_specs,
        out_specs=out_specs,
        compiler_params=pltpu.CompilerParams(
            # Independent batch tiles -> parallel (megacore sharding on v7x).
            dimension_semantics=("parallel",),
            # Explicit, generous-but-safe scoped VMEM for large batch tiles.
            vmem_limit_bytes=32 * 1024 * 1024),
    )(x, w1, b1, w2, b2, w3, b3, w4, b4)


# ---------------------------------------------------------------------------
# Parameter setup: mimics nn.Linear default init; last-layer bias is zero
# (DQNWithSocialEncoder.init()). Heads are packed along the feature/lane axis:
# W1 concatenated, W2/W3 block-diagonal, W4 packed into a lane-dense slab.
# ---------------------------------------------------------------------------
def _linear_params(key, fan_in, fan_out, zero_bias=False):
    kw, kb = jax.random.split(key)
    bound = 1.0 / jnp.sqrt(jnp.float32(fan_in))
    # PyTorch stores weight as (out, in); we store the transpose (in, out).
    w = jax.random.uniform(kw, (fan_in, fan_out), jnp.float32, -bound, bound)
    if zero_bias:
        b = jnp.zeros((1, fan_out), jnp.float32)
    else:
        b = jax.random.uniform(kb, (1, fan_out), jnp.float32, -bound, bound)
    return w, b


def make_packed_q_heads_params(key, state_size, hidden_dim, num_actions):
    H = len(num_actions)
    hd, hd2, hd4 = hidden_dim, hidden_dim // 2, hidden_dim // 4
    a_total = sum(num_actions)
    a_pad = _round_up(a_total, 128)
    offsets = [0]
    for na in num_actions:
        offsets.append(offsets[-1] + na)

    head_keys = jax.random.split(key, H)
    w1_cols, b1_cols, b2_cols, b3_cols = [], [], [], []
    w2_bd = jnp.zeros((H * hd, H * hd2), jnp.float32)
    w3_bd = jnp.zeros((H * hd2, H * hd4), jnp.float32)
    w4_packed = jnp.zeros((H * hd4, a_pad), jnp.float32)

    for h, (hk, na) in enumerate(zip(head_keys, num_actions)):
        k1, k2, k3, k4 = jax.random.split(hk, 4)
        w1, b1 = _linear_params(k1, state_size, hd)
        w2, b2 = _linear_params(k2, hd, hd2)
        w3, b3 = _linear_params(k3, hd2, hd4)
        w4, _ = _linear_params(k4, hd4, na, zero_bias=True)
        w1_cols.append(w1)
        b1_cols.append(b1)
        w2_bd = w2_bd.at[h * hd:(h + 1) * hd, h * hd2:(h + 1) * hd2].set(w2)
        b2_cols.append(b2)
        w3_bd = w3_bd.at[h * hd2:(h + 1) * hd2, h * hd4:(h + 1) * hd4].set(w3)
        b3_cols.append(b3)
        w4_packed = w4_packed.at[h * hd4:(h + 1) * hd4,
                                 offsets[h]:offsets[h] + na].set(w4)

    # NOTE: weights could be stored in bf16 on v6e/v7x (halve DMA/VMEM); kept
    # f32 here so the in-file reference check stays tight across generations.
    return {
        "w1": jnp.concatenate(w1_cols, axis=1),        # [S, H*hd]
        "b1": jnp.concatenate(b1_cols, axis=1),        # [1, H*hd]
        "w2": w2_bd,                                   # [H*hd, H*hd2]
        "b2": jnp.concatenate(b2_cols, axis=1),        # [1, H*hd2]
        "w3": w3_bd,                                   # [H*hd2, H*hd4]
        "b3": jnp.concatenate(b3_cols, axis=1),        # [1, H*hd4]
        "w4": w4_packed,                               # [H*hd4, A_PAD]
        "b4": jnp.zeros((1, a_pad), jnp.float32),      # zero (module init())
        "offsets": offsets,
        "dims": (hd, hd2, hd4),
    }


# ---------------------------------------------------------------------------
# Forward pass (social_feature_encoder is None, training=False).
# ---------------------------------------------------------------------------
def dqn_with_social_encoder_forward(state, packed_params, num_actions):
    """Returns a list of per-head Q-value arrays [B, num_action_i]."""
    low_dim_state = state["low_dim_states"]
    social_vehicles_state = state["social_vehicles"]
    B = low_dim_state.shape[0]

    # social_feature = cat([e.reshape(1,-1) for e in social_vehicles], 0)
    social_feature = social_vehicles_state.reshape(B, -1)
    x = jnp.concatenate([low_dim_state, social_feature], axis=-1)

    out = fused_q_heads(x, packed_params)          # [B_pad, A_PAD]
    offsets = packed_params["offsets"]
    return [out[:B, offsets[h]:offsets[h] + na]
            for h, na in enumerate(num_actions)]


if __name__ == "__main__":
    # Small, deterministic example shapes.
    B = 2
    low_dim = 16
    num_vehicles = 5
    veh_feat = 4
    state_size = low_dim + num_vehicles * veh_feat   # 36
    hidden_dim = 32
    num_actions = [4, 3]                             # two Q heads (ModuleList)

    key = jax.random.PRNGKey(0)
    k_low, k_soc, k_params = jax.random.split(key, 3)

    state = {
        "low_dim_states": jax.random.normal(k_low, (B, low_dim), jnp.float32),
        "social_vehicles": jax.random.normal(
            k_soc, (B, num_vehicles, veh_feat), jnp.float32),
    }

    packed = make_packed_q_heads_params(
        k_params, state_size, hidden_dim, num_actions)

    outs = dqn_with_social_encoder_forward(state, packed, num_actions)
    outs = jax.block_until_ready(outs)

    # Shape contract matches the PyTorch module's output list.
    assert len(outs) == len(num_actions)
    for o, na in zip(outs, num_actions):
        assert o.shape == (B, na), o.shape
        assert o.dtype == jnp.float32

    # Reference check: per-head pure-jnp forward with weights unpacked from
    # the same packed parameters (block-diag / packed layout is an exact
    # re-arrangement, so results must agree).
    x = jnp.concatenate(
        [state["low_dim_states"], state["social_vehicles"].reshape(B, -1)], -1)
    hd, hd2, hd4 = packed["dims"]
    offsets = packed["offsets"]
    for h, na in enumerate(num_actions):
        w1 = packed["w1"][:, h * hd:(h + 1) * hd]
        b1 = packed["b1"][:, h * hd:(h + 1) * hd]
        w2 = packed["w2"][h * hd:(h + 1) * hd, h * hd2:(h + 1) * hd2]
        b2 = packed["b2"][:, h * hd2:(h + 1) * hd2]
        w3 = packed["w3"][h * hd2:(h + 1) * hd2, h * hd4:(h + 1) * hd4]
        b3 = packed["b3"][:, h * hd4:(h + 1) * hd4]
        w4 = packed["w4"][h * hd4:(h + 1) * hd4, offsets[h]:offsets[h] + na]
        r = jnp.maximum(x @ w1 + b1, 0.0)
        r = jnp.maximum(r @ w2 + b2, 0.0)
        r = jnp.maximum(r @ w3 + b3, 0.0)
        r = r @ w4                                   # last-layer bias is zero
        assert jnp.allclose(outs[h], r, atol=1e-4, rtol=1e-4), (
            float(jnp.max(jnp.abs(outs[h] - r))))

    print("KERNEL_OK")
</pallas_src>

<mosaic_0001>
module attributes {stable_mosaic.version = 11 : i64} {
  func.func @_fused_mlp_kernel(%arg0: i32, %arg1: memref<8x36xf32, #tpu.memory_space<vmem>>, %arg2: memref<36x64xf32, #tpu.memory_space<vmem>>, %arg3: memref<1x64xf32, #tpu.memory_space<vmem>>, %arg4: memref<64x32xf32, #tpu.memory_space<vmem>>, %arg5: memref<1x32xf32, #tpu.memory_space<vmem>>, %arg6: memref<32x16xf32, #tpu.memory_space<vmem>>, %arg7: memref<1x16xf32, #tpu.memory_space<vmem>>, %arg8: memref<16x128xf32, #tpu.memory_space<vmem>>, %arg9: memref<1x128xf32, #tpu.memory_space<vmem>>, %arg10: memref<8x128xf32, #tpu.memory_space<vmem>>) attributes {dimension_semantics = [#tpu.dimension_semantics<parallel>], iteration_bounds = array<i64: 1>, scalar_prefetch = 0 : i64, scratch_operands = 0 : i64, tpu.core_type = #tpu.core_type<tc>, window_params = [{transform_indices = @transform_0, window_bounds = array<i64: 8, 36>}, {pipeline_mode = #tpu.pipeline_mode<synchronous>, transform_indices = @transform_1, window_bounds = array<i64: 36, 64>}, {pipeline_mode = #tpu.pipeline_mode<synchronous>, transform_indices = @transform_2, window_bounds = array<i64: 1, 64>}, {pipeline_mode = #tpu.pipeline_mode<synchronous>, transform_indices = @transform_3, window_bounds = array<i64: 64, 32>}, {pipeline_mode = #tpu.pipeline_mode<synchronous>, transform_indices = @transform_4, window_bounds = array<i64: 1, 32>}, {pipeline_mode = #tpu.pipeline_mode<synchronous>, transform_indices = @transform_5, window_bounds = array<i64: 32, 16>}, {pipeline_mode = #tpu.pipeline_mode<synchronous>, transform_indices = @transform_6, window_bounds = array<i64: 1, 16>}, {pipeline_mode = #tpu.pipeline_mode<synchronous>, transform_indices = @transform_7, window_bounds = array<i64: 16, 128>}, {pipeline_mode = #tpu.pipeline_mode<synchronous>, transform_indices = @transform_8, window_bounds = array<i64: 1, 128>}, {transform_indices = @transform_9, window_bounds = array<i64: 8, 128>}]} {
    %c0 = arith.constant 0 : index
    %c0_0 = arith.constant 0 : index
    %0 = vector.load %arg1[%c0, %c0_0] : memref<8x36xf32, #tpu.memory_space<vmem>>, vector<8x36xf32>
    %c0_1 = arith.constant 0 : index
    %c0_2 = arith.constant 0 : index
    %1 = vector.load %arg2[%c0_1, %c0_2] : memref<36x64xf32, #tpu.memory_space<vmem>>, vector<36x64xf32>
    %cst = arith.constant dense<0.000000e+00> : vector<8x64xf32>
    %2 = tpu.matmul %0, %1, %cst {dimension_numbers = #tpu.dot_dimension_numbers<[1], [0], [0], [1], [0, 0, 1, 1], [], []>} : vector<8x36xf32>, vector<36x64xf32>, vector<8x64xf32> -> vector<8x64xf32>
    %c0_3 = arith.constant 0 : index
    %c0_4 = arith.constant 0 : index
    %3 = vector.load %arg3[%c0_3, %c0_4] : memref<1x64xf32, #tpu.memory_space<vmem>>, vector<1x64xf32>
    %4 = vector.broadcast %3 : vector<1x64xf32> to vector<8x64xf32>
    %5 = arith.addf %2, %4 : vector<8x64xf32>
    %cst_5 = arith.constant 0.000000e+00 : f32
    %6 = vector.broadcast %cst_5 : f32 to vector<8x64xf32>
    %7 = arith.maximumf %5, %6 : vector<8x64xf32>
    %c0_6 = arith.constant 0 : index
    %c0_7 = arith.constant 0 : index
    %8 = vector.load %arg4[%c0_6, %c0_7] : memref<64x32xf32, #tpu.memory_space<vmem>>, vector<64x32xf32>
    %cst_8 = arith.constant dense<0.000000e+00> : vector<8x32xf32>
    %9 = tpu.matmul %7, %8, %cst_8 {dimension_numbers = #tpu.dot_dimension_numbers<[1], [0], [0], [1], [0, 0, 1, 1], [], []>} : vector<8x64xf32>, vector<64x32xf32>, vector<8x32xf32> -> vector<8x32xf32>
    %c0_9 = arith.constant 0 : index
    %c0_10 = arith.constant 0 : index
    %10 = vector.load %arg5[%c0_9, %c0_10] : memref<1x32xf32, #tpu.memory_space<vmem>>, vector<1x32xf32>
    %11 = vector.broadcast %10 : vector<1x32xf32> to vector<8x32xf32>
    %12 = arith.addf %9, %11 : vector<8x32xf32>
    %cst_11 = arith.constant 0.000000e+00 : f32
    %13 = vector.broadcast %cst_11 : f32 to vector<8x32xf32>
    %14 = arith.maximumf %12, %13 : vector<8x32xf32>
    %c0_12 = arith.constant 0 : index
    %c0_13 = arith.constant 0 : index
    %15 = vector.load %arg6[%c0_12, %c0_13] : memref<32x16xf32, #tpu.memory_space<vmem>>, vector<32x16xf32>
    %cst_14 = arith.constant dense<0.000000e+00> : vector<8x16xf32>
    %16 = tpu.matmul %14, %15, %cst_14 {dimension_numbers = #tpu.dot_dimension_numbers<[1], [0], [0], [1], [0, 0, 1, 1], [], []>} : vector<8x32xf32>, vector<32x16xf32>, vector<8x16xf32> -> vector<8x16xf32>
    %c0_15 = arith.constant 0 : index
    %c0_16 = arith.constant 0 : index
    %17 = vector.load %arg7[%c0_15, %c0_16] : memref<1x16xf32, #tpu.memory_space<vmem>>, vector<1x16xf32>
    %18 = vector.broadcast %17 : vector<1x16xf32> to vector<8x16xf32>
    %19 = arith.addf %16, %18 : vector<8x16xf32>
    %cst_17 = arith.constant 0.000000e+00 : f32
    %20 = vector.broadcast %cst_17 : f32 to vector<8x16xf32>
    %21 = arith.maximumf %19, %20 : vector<8x16xf32>
    %c0_18 = arith.constant 0 : index
    %c0_19 = arith.constant 0 : index
    %22 = vector.load %arg8[%c0_18, %c0_19] : memref<16x128xf32, #tpu.memory_space<vmem>>, vector<16x128xf32>
    %cst_20 = arith.constant dense<0.000000e+00> : vector<8x128xf32>
    %23 = tpu.matmul %21, %22, %cst_20 {dimension_numbers = #tpu.dot_dimension_numbers<[1], [0], [0], [1], [0, 0, 1, 1], [], []>} : vector<8x16xf32>, vector<16x128xf32>, vector<8x128xf32> -> vector<8x128xf32>
    %c0_21 = arith.constant 0 : index
    %c0_22 = arith.constant 0 : index
    %24 = vector.load %arg9[%c0_21, %c0_22] : memref<1x128xf32, #tpu.memory_space<vmem>>, vector<1x128xf32>
    %25 = vector.broadcast %24 : vector<1x128xf32> to vector<8x128xf32>
    %26 = arith.addf %23, %25 : vector<8x128xf32>
    %c0_23 = arith.constant 0 : index
    %c0_24 = arith.constant 0 : index
    %27 = vector.load %arg10[%c0_23, %c0_24] : memref<8x128xf32, #tpu.memory_space<vmem>>, vector<8x128xf32>
    tpu.vector_store %arg10[%c0_23, %c0_24], %26 {strides = array<i32>} : memref<8x128xf32, #tpu.memory_space<vmem>>, vector<8x128xf32>,
    return
  }
  func.func @transform_0(%arg0: i32) -> (i32, i32) {
    %c0_i32 = arith.constant 0 : i32
    %c0_i32_0 = arith.constant 0 : i32
    return %arg0, %c0_i32 : i32, i32
  }
  func.func @transform_1(%arg0: i32) -> (i32, i32) {
    %c0_i32 = arith.constant 0 : i32
    %c0_i32_0 = arith.constant 0 : i32
    %c0_i32_1 = arith.constant 0 : i32
    return %c0_i32, %c0_i32_0 : i32, i32
  }
  func.func @transform_2(%arg0: i32) -> (i32, i32) {
    %c0_i32 = arith.constant 0 : i32
    %c0_i32_0 = arith.constant 0 : i32
    %c0_i32_1 = arith.constant 0 : i32
    return %c0_i32, %c0_i32_0 : i32, i32
  }
  func.func @transform_3(%arg0: i32) -> (i32, i32) {
    %c0_i32 = arith.constant 0 : i32
    %c0_i32_0 = arith.constant 0 : i32
    %c0_i32_1 = arith.constant 0 : i32
    return %c0_i32, %c0_i32_0 : i32, i32
  }
  func.func @transform_4(%arg0: i32) -> (i32, i32) {
    %c0_i32 = arith.constant 0 : i32
    %c0_i32_0 = arith.constant 0 : i32
    %c0_i32_1 = arith.constant 0 : i32
    return %c0_i32, %c0_i32_0 : i32, i32
  }
  func.func @transform_5(%arg0: i32) -> (i32, i32) {
    %c0_i32 = arith.constant 0 : i32
    %c0_i32_0 = arith.constant 0 : i32
    %c0_i32_1 = arith.constant 0 : i32
    return %c0_i32, %c0_i32_0 : i32, i32
  }
  func.func @transform_6(%arg0: i32) -> (i32, i32) {
    %c0_i32 = arith.constant 0 : i32
    %c0_i32_0 = arith.constant 0 : i32
    %c0_i32_1 = arith.constant 0 : i32
    return %c0_i32, %c0_i32_0 : i32, i32
  }
  func.func @transform_7(%arg0: i32) -> (i32, i32) {
    %c0_i32 = arith.constant 0 : i32
    %c0_i32_0 = arith.constant 0 : i32
    %c0_i32_1 = arith.constant 0 : i32
    return %c0_i32, %c0_i32_0 : i32, i32
  }
  func.func @transform_8(%arg0: i32) -> (i32, i32) {
    %c0_i32 = arith.constant 0 : i32
    %c0_i32_0 = arith.constant 0 : i32
    %c0_i32_1 = arith.constant 0 : i32
    return %c0_i32, %c0_i32_0 : i32, i32
  }
  func.func @transform_9(%arg0: i32) -> (i32, i32) {
    %c0_i32 = arith.constant 0 : i32
    %c0_i32_0 = arith.constant 0 : i32
    return %arg0, %c0_i32 : i32, i32
  }
}

</mosaic_0001>

<llo_original>
// kernel: tpu_custom_call.1
$region0: #{tpu_custom_call.1}
  #allocation0 [shape = 'u32[]', space=smem, size = 0x4, offset = 0x4, fixed_abs, tag = 'smem constant byte address 0x4 - core index']
  #allocation1 [shape = 'u32[144,128]{1,0:T(1,128)}', space=vmem, size = 0x12000, scoped, tag = 'internal scratch']
  %s0 = inlined_call_operand.vmem [shape: f32[8,36], index: 0, kind: input, shape index: {}]
  %s1 = inlined_call_operand.vmem [shape: f32[36,64], index: 1, kind: input, shape index: {}]
  %s2 = inlined_call_operand.vmem [shape: f32[1,64], index: 2, kind: input, shape index: {}]
  %s3 = inlined_call_operand.vmem [shape: f32[64,32], index: 3, kind: input, shape index: {}]
  %s4 = inlined_call_operand.vmem [shape: f32[1,32], index: 4, kind: input, shape index: {}]
  %s5 = inlined_call_operand.vmem [shape: f32[32,16], index: 5, kind: input, shape index: {}]
  %s6 = inlined_call_operand.vmem [shape: f32[1,16], index: 6, kind: input, shape index: {}]
  %s7 = inlined_call_operand.vmem [shape: f32[16,128], index: 7, kind: input, shape index: {}]
  %s8 = inlined_call_operand.vmem [shape: f32[1,128], index: 8, kind: input, shape index: {}]
  %s9 = inlined_call_operand.hbm [shape: f32[8,128], index: 9, kind: output, shape index: {}]
  %s10 = sld [smem:[#allocation0]]
  $region46: #{tpu_custom_call.1} parent=0
    _
  %s12 = ssub.s32 1, %s10
  %s13 = scalar_select 0, %s12, %s10
  $region1: #{tpu_custom_call.1} parent=0
    #allocation2 [shape = 'u8[4096]{0}', space=vmem, size = 0x1000, scoped, tag = 'output window, operand 0, single buffered']
    #allocation3 [shape = 's32[1]{0}', space=sflag, size = 0x4, scoped, tag = 'scoped memory for tpu_custom_call.1']
    %14 = vsyncpa [#allocation3], 0
    // Predicated region
    $region2: #{tpu_custom_call.1} parent=1 // pred_check
      _
    $region3: #{tpu_custom_call.1} parent=1 // pred_check_branch
      %16 = sbr.rel (0) target = $region5
    $region4: #{tpu_custom_call.1} parent=1 // pred_region
      _
    $region5: #{tpu_custom_call.1} parent=1 // pred_fallthru
      _
    // Predicated region
    $region6: #{tpu_custom_call.1} parent=1 // pred_check
      _
    $region7: #{tpu_custom_call.1} parent=1 // pred_check_branch
      %18 = sbr.rel (0) target = $region9
    $region8: #{tpu_custom_call.1} parent=1 // pred_region
      _
    $region9: #{tpu_custom_call.1} parent=1 // pred_fallthru
      _
    // Predicated region
    $region10: #{tpu_custom_call.1} parent=1 // pred_check
      _
    $region11: #{tpu_custom_call.1} parent=1 // pred_check_branch
      %20 = sbr.rel (0) target = $region13
    $region12: #{tpu_custom_call.1} parent=1 // pred_region
      _
    $region13: #{tpu_custom_call.1} parent=1 // pred_fallthru
      _
    // Predicated region
    $region14: #{tpu_custom_call.1} parent=1 // pred_check
      _
    $region15: #{tpu_custom_call.1} parent=1 // pred_check_branch
      %22 = sbr.rel (0) target = $region17
    $region16: #{tpu_custom_call.1} parent=1 // pred_region
      _
    $region17: #{tpu_custom_call.1} parent=1 // pred_fallthru
      _
    // Predicated region
    $region18: #{tpu_custom_call.1} parent=1 // pred_check
      _
    $region19: #{tpu_custom_call.1} parent=1 // pred_check_branch
      %24 = sbr.rel (0) target = $region21
    $region20: #{tpu_custom_call.1} parent=1 // pred_region
      _
    $region21: #{tpu_custom_call.1} parent=1 // pred_fallthru
      _
    // Predicated region
    $region22: #{tpu_custom_call.1} parent=1 // pred_check
      _
    $region23: #{tpu_custom_call.1} parent=1 // pred_check_branch
      %26 = sbr.rel (0) target = $region25
    $region24: #{tpu_custom_call.1} parent=1 // pred_region
      _
    $region25: #{tpu_custom_call.1} parent=1 // pred_fallthru
      _
    // Predicated region
    $region26: #{tpu_custom_call.1} parent=1 // pred_check
      _
    $region27: #{tpu_custom_call.1} parent=1 // pred_check_branch
      %28 = sbr.rel (0) target = $region29
    $region28: #{tpu_custom_call.1} parent=1 // pred_region
      _
    $region29: #{tpu_custom_call.1} parent=1 // pred_fallthru
      _
    // Predicated region
    $region30: #{tpu_custom_call.1} parent=1 // pred_check
      _
    $region31: #{tpu_custom_call.1} parent=1 // pred_check_branch
      %30 = sbr.rel (0) target = $region33
    $region32: #{tpu_custom_call.1} parent=1 // pred_region
      _
    $region33: #{tpu_custom_call.1} parent=1 // pred_fallthru
      _
    // Predicated region
    $region34: #{tpu_custom_call.1} parent=1 // pred_check
      _
    $region35: #{tpu_custom_call.1} parent=1 // pred_check_branch
      %32 = sbr.rel (0) target = $region37
    $region36: #{tpu_custom_call.1} parent=1 // pred_region
      _
    $region37: #{tpu_custom_call.1} parent=1 // pred_fallthru
      _
    %v33 = vld [vmem:[%s0] sm:$0xff]
    %v34 = vld [vmem:[%s1] sm:$0xff]
    %v35 = vld [vmem:[%s1 + $0x8] sm:$0xff]
    %v36 = vld [vmem:[%s1 + $0x10] sm:$0xff]
    %v37 = vld [vmem:[%s1 + $0x18] sm:$0xff]
    %v38 = vld [vmem:[%s1 + $0x20] sm:$0xf]
    %v39 = vld [vmem:[%s2] sm:$0x1]
    %v41 = vlaneseq
    %v42 = vshrl.u32 %v41, 7
    %v43 = vsub.s32 0, %v42
    %v44 = vrot.slane %v39, %v43
    %vm46 = vcmask 293888
    %v48 = vsel %vm46, %v33, 0
    %vm50 = vcmask 1043456
    %v52 = vsel %vm50, %v38, 0
    %54 = vmatprep.subr.mxu0 0.0
    %55 = vmatpush1.msra.mxu0 %v34
    %56 = vmatprep.subr.mxu0 0.0
    %57 = vmatpush1.msra.mxu0 %v35
    %58 = vmatprep.subr.mxu0 0.0
    %59 = vmatpush1.msra.mxu0 %v36
    %60 = vmatprep.subr.mxu0 0.0
    %61 = vmatpush1.msra.mxu0 %v37
    %62 = vmatprep.subr.mxu0 0.0
    %63 = vmatpush1.msra.mxu0 %v52
    %64 = vmatprep.subr.mxu0 0.0
    %65 = vmatpush1.msra.mxu0 0.0
    %66 = vmatprep.subr.mxu0 0.0
    %67 = vmatpush1.msra.mxu0 0.0
    %68 = vmatprep.subr.mxu0 0.0
    %69 = vmatpush1.msra.mxu0 0.0
    %70 = vmatprep.subr.mxu0 0.0
    %71 = vmatpush1.msra.mxu0 0.0
    %72 = vmatprep.subr.mxu0 0.0
    %73 = vmatpush1.msra.mxu0 0.0
    %74 = vmatprep.subr.mxu0 0.0
    %75 = vmatpush1.msra.mxu0 0.0
    %76 = vmatprep.subr.mxu0 0.0
    %77 = vmatpush1.msra.mxu0 0.0
    %78 = vmatprep.subr.mxu0 0.0
    %79 = vmatpush1.msra.mxu0 0.0
    %80 = vmatprep.subr.mxu0 0.0
    %81 = vmatpush1.msra.mxu0 0.0
    %82 = vmatprep.subr.mxu0 0.0
    %83 = vmatpush1.msra.mxu0 0.0
    %84 = vmatprep.subr.mxu0 0.0
    %85 = vmatpush1.msra.mxu0 0.0
    %86 = vmatprep.subr.mxu0 0.0
    %87 = vmatpush1.msra.mxu0 0.0
    %88 = vmatprep.subr.mxu0 0.0
    %89 = vmatpush1.msra.mxu0 0.0
    %90 = vmatprep.subr.mxu0 0.0
    %91 = vmatpush1.msra.mxu0 0.0
    %92 = vmatprep.subr.mxu0 0.0
    %93 = vmatpush1.msra.mxu0 0.0
    %94 = vmatprep.subr.mxu0 0.0
    %95 = vmatpush1.msra.mxu0 0.0
    %96 = vmatprep.subr.mxu0 0.0
    %97 = vmatpush1.msra.mxu0 0.0
    %98 = vmatprep.subr.mxu0 0.0
    %99 = vmatpush1.msra.mxu0 0.0
    %100 = vmatprep.subr.mxu0 0.0
    %101 = vmatpush1.msra.mxu0 0.0
    %102 = vmatprep.subr.mxu0 0.0
    %103 = vmatpush1.msra.mxu0 0.0
    %104 = vmatprep.subr.mxu0 0.0
    %105 = vmatpush1.msra.mxu0 0.0
    %106 = vmatprep.subr.mxu0 0.0
    %107 = vmatpush1.msra.mxu0 0.0
    %108 = vmatprep.subr.mxu0 0.0
    %109 = vmatpush1.msra.mxu0 0.0
    %110 = vmatprep.subr.mxu0 0.0
    %111 = vmatpush1.msra.mxu0 0.0
    %112 = vmatprep.subr.mxu0 0.0
    %113 = vmatpush1.msra.mxu0 0.0
    %114 = vmatprep.subr.mxu0 0.0
    %115 = vmatpush1.msra.mxu0 0.0
    %116 = vmatprep.subr.mxu0 0.0
    %117 = vmatpush1.msra.mxu0 0.0
    %118 = vmatprep.mubr.f32.mxu0 0.0
    %119 = vmatmul.mubr.f32.gmra.mrb[0].mxu0 %v48
    %v120 = vpop.f32.mrb[0].mxu0
    %v121 = vadd.f32 %v44, %v120
    %v122 = vpop.f32.mrb[0].mxu0
    %123 = vdwg.mxu0
    %v124 = vmax.f32 %v121, 0.0
    %v125 = vld [vmem:[%s3] sm:$0xff]
    %v126 = vld [vmem:[%s3 + $0x8] sm:$0xff]
    %v127 = vld [vmem:[%s3 + $0x10] sm:$0xff]
    %v128 = vld [vmem:[%s3 + $0x18] sm:$0xff]
    %v129 = vld [vmem:[%s3 + $0x20] sm:$0xff]
    %v130 = vld [vmem:[%s3 + $0x28] sm:$0xff]
    %v131 = vld [vmem:[%s3 + $0x30] sm:$0xff]
    %v132 = vld [vmem:[%s3 + $0x38] sm:$0xff]
    %v133 = vld [vmem:[%s4] sm:$0x1]
    %v135 = vlaneseq
    %v136 = vshrl.u32 %v135, 7
    %v137 = vsub.s32 0, %v136
    %v138 = vrot.slane %v133, %v137
    %vm140 = vcmask 523264
    %v142 = vsel %vm140, %v124, 0
    %144 = vmatprep.subr.mxu0 0.0
    %145 = vmatpush1.msra.mxu0 %v125
    %146 = vmatprep.subr.mxu0 0.0
    %147 = vmatpush1.msra.mxu0 %v126
    %148 = vmatprep.subr.mxu0 0.0
    %149 = vmatpush1.msra.mxu0 %v127
    %150 = vmatprep.subr.mxu0 0.0
    %151 = vmatpush1.msra.mxu0 %v128
    %152 = vmatprep.subr.mxu0 0.0
    %153 = vmatpush1.msra.mxu0 %v129
    %154 = vmatprep.subr.mxu0 0.0
    %155 = vmatpush1.msra.mxu0 %v130
    %156 = vmatprep.subr.mxu0 0.0
    %157 = vmatpush1.msra.mxu0 %v131
    %158 = vmatprep.subr.mxu0 0.0
    %159 = vmatpush1.msra.mxu0 %v132
    %160 = vmatprep.subr.mxu0 0.0
    %161 = vmatpush1.msra.mxu0 0.0
    %162 = vmatprep.subr.mxu0 0.0
    %163 = vmatpush1.msra.mxu0 0.0
    %164 = vmatprep.subr.mxu0 0.0
    %165 = vmatpush1.msra.mxu0 0.0
    %166 = vmatprep.subr.mxu0 0.0
    %167 = vmatpush1.msra.mxu0 0.0
    %168 = vmatprep.subr.mxu0 0.0
    %169 = vmatpush1.msra.mxu0 0.0
    %170 = vmatprep.subr.mxu0 0.0
    %171 = vmatpush1.msra.mxu0 0.0
    %172 = vmatprep.subr.mxu0 0.0
    %173 = vmatpush1.msra.mxu0 0.0
    %174 = vmatprep.subr.mxu0 0.0
    %175 = vmatpush1.msra.mxu0 0.0
    %176 = vmatprep.subr.mxu0 0.0
    %177 = vmatpush1.msra.mxu0 0.0
    %178 = vmatprep.subr.mxu0 0.0
    %179 = vmatpush1.msra.mxu0 0.0
    %180 = vmatprep.subr.mxu0 0.0
    %181 = vmatpush1.msra.mxu0 0.0
    %182 = vmatprep.subr.mxu0 0.0
    %183 = vmatpush1.msra.mxu0 0.0
    %184 = vmatprep.subr.mxu0 0.0
    %185 = vmatpush1.msra.mxu0 0.0
    %186 = vmatprep.subr.mxu0 0.0
    %187 = vmatpush1.msra.mxu0 0.0
    %188 = vmatprep.subr.mxu0 0.0
    %189 = vmatpush1.msra.mxu0 0.0
    %190 = vmatprep.subr.mxu0 0.0
    %191 = vmatpush1.msra.mxu0 0.0
    %192 = vmatprep.subr.mxu0 0.0
    %193 = vmatpush1.msra.mxu0 0.0
    %194 = vmatprep.subr.mxu0 0.0
    %195 = vmatpush1.msra.mxu0 0.0
    %196 = vmatprep.subr.mxu0 0.0
    %197 = vmatpush1.msra.mxu0 0.0
    %198 = vmatprep.subr.mxu0 0.0
    %199 = vmatpush1.msra.mxu0 0.0
    %200 = vmatprep.subr.mxu0 0.0
    %201 = vmatpush1.msra.mxu0 0.0
    %202 = vmatprep.subr.mxu0 0.0
    %203 = vmatpush1.msra.mxu0 0.0
    %204 = vmatprep.subr.mxu0 0.0
    %205 = vmatpush1.msra.mxu0 0.0
    %206 = vmatprep.subr.mxu0 0.0
    %207 = vmatpush1.msra.mxu0 0.0
    %208 = vmatprep.mubr.f32.mxu0 0.0
    %209 = vmatmul.mubr.f32.gmra.mrb[0].mxu0 %v142
    %v210 = vpop.f32.mrb[0].mxu0
    %v211 = vadd.f32 %v138, %v210
    %v212 = vpop.f32.mrb[0].mxu0
    %213 = vdwg.mxu0
    %v214 = vmax.f32 %v211, 0.0
    %v215 = vld [vmem:[%s5] sm:$0xff]
    %v216 = vld [vmem:[%s5 + $0x8] sm:$0xff]
    %v217 = vld [vmem:[%s5 + $0x10] sm:$0xff]
    %v218 = vld [vmem:[%s5 + $0x18] sm:$0xff]
    %v219 = vld [vmem:[%s6] sm:$0x1]
    %v221 = vlaneseq
    %v222 = vshrl.u32 %v221, 7
    %v223 = vsub.s32 0, %v222
    %v224 = vrot.slane %v219, %v223
    %vm226 = vcmask 261120
    %v228 = vsel %vm226, %v214, 0
    %230 = vmatprep.subr.mxu0 0.0
    %231 = vmatpush1.msra.mxu0 %v215
    %232 = vmatprep.subr.mxu0 0.0
    %233 = vmatpush1.msra.mxu0 %v216
    %234 = vmatprep.subr.mxu0 0.0
    %235 = vmatpush1.msra.mxu0 %v217
    %236 = vmatprep.subr.mxu0 0.0
    %237 = vmatpush1.msra.mxu0 %v218
    %238 = vmatprep.subr.mxu0 0.0
    %239 = vmatpush1.msra.mxu0 0.0
    %240 = vmatprep.subr.mxu0 0.0
    %241 = vmatpush1.msra.mxu0 0.0
    %242 = vmatprep.subr.mxu0 0.0
    %243 = vmatpush1.msra.mxu0 0.0
    %244 = vmatprep.subr.mxu0 0.0
    %245 = vmatpush1.msra.mxu0 0.0
    %246 = vmatprep.subr.mxu0 0.0
    %247 = vmatpush1.msra.mxu0 0.0
    %248 = vmatprep.subr.mxu0 0.0
    %249 = vmatpush1.msra.mxu0 0.0
    %250 = vmatprep.subr.mxu0 0.0
    %251 = vmatpush1.msra.mxu0 0.0
    %252 = vmatprep.subr.mxu0 0.0
    %253 = vmatpush1.msra.mxu0 0.0
    %254 = vmatprep.subr.mxu0 0.0
    %255 = vmatpush1.msra.mxu0 0.0
    %256 = vmatprep.subr.mxu0 0.0
    %257 = vmatpush1.msra.mxu0 0.0
    %258 = vmatprep.subr.mxu0 0.0
    %259 = vmatpush1.msra.mxu0 0.0
    %260 = vmatprep.subr.mxu0 0.0
    %261 = vmatpush1.msra.mxu0 0.0
    %262 = vmatprep.subr.mxu0 0.0
    %263 = vmatpush1.msra.mxu0 0.0
    %264 = vmatprep.subr.mxu0 0.0
    %265 = vmatpush1.msra.mxu0 0.0
    %266 = vmatprep.subr.mxu0 0.0
    %267 = vmatpush1.msra.mxu0 0.0
    %268 = vmatprep.subr.mxu0 0.0
    %269 = vmatpush1.msra.mxu0 0.0
    %270 = vmatprep.subr.mxu0 0.0
    %271 = vmatpush1.msra.mxu0 0.0
    %272 = vmatprep.subr.mxu0 0.0
    %273 = vmatpush1.msra.mxu0 0.0
    %274 = vmatprep.subr.mxu0 0.0
    %275 = vmatpush1.msra.mxu0 0.0
    %276 = vmatprep.subr.mxu0 0.0
    %277 = vmatpush1.msra.mxu0 0.0
    %278 = vmatprep.subr.mxu0 0.0
    %279 = vmatpush1.msra.mxu0 0.0
    %280 = vmatprep.subr.mxu0 0.0
    %281 = vmatpush1.msra.mxu0 0.0
    %282 = vmatprep.subr.mxu0 0.0
    %283 = vmatpush1.msra.mxu0 0.0
    %284 = vmatprep.subr.mxu0 0.0
    %285 = vmatpush1.msra.mxu0 0.0
    %286 = vmatprep.subr.mxu0 0.0
    %287 = vmatpush1.msra.mxu0 0.0
    %288 = vmatprep.subr.mxu0 0.0
    %289 = vmatpush1.msra.mxu0 0.0
    %290 = vmatprep.subr.mxu0 0.0
    %291 = vmatpush1.msra.mxu0 0.0
    %292 = vmatprep.subr.mxu0 0.0
    %293 = vmatpush1.msra.mxu0 0.0
    %294 = vmatprep.mubr.f32.mxu0 0.0
    %295 = vmatmul.mubr.f32.gmra.mrb[0].mxu0 %v228
    %v296 = vpop.f32.mrb[0].mxu0
    %v297 = vadd.f32 %v224, %v296
    %v298 = vpop.f32.mrb[0].mxu0
    %299 = vdwg.mxu0
    %v300 = vmax.f32 %v297, 0.0
    %v301 = vld [vmem:[%s7] sm:$0xff]
    %v302 = vld [vmem:[%s7 + $0x8] sm:$0xff]
    %v303 = vld [vmem:[%s8] sm:$0x1]
    %v305 = vlaneseq
    %v306 = vshrl.u32 %v305, 7
    %v307 = vsub.s32 0, %v306
    %v308 = vrot.slane %v303, %v307
    %vm310 = vcmask 130048
    %v312 = vsel %vm310, %v300, 0
    %314 = vmatprep.subr.mxu0 0.0
    %315 = vmatpush1.msra.mxu0 %v301
    %316 = vmatprep.subr.mxu0 0.0
    %317 = vmatpush1.msra.mxu0 %v302
    %318 = vmatprep.subr.mxu0 0.0
    %319 = vmatpush1.msra.mxu0 0.0
    %320 = vmatprep.subr.mxu0 0.0
    %321 = vmatpush1.msra.mxu0 0.0
    %322 = vmatprep.subr.mxu0 0.0
    %323 = vmatpush1.msra.mxu0 0.0
    %324 = vmatprep.subr.mxu0 0.0
    %325 = vmatpush1.msra.mxu0 0.0
    %326 = vmatprep.subr.mxu0 0.0
    %327 = vmatpush1.msra.mxu0 0.0
    %328 = vmatprep.subr.mxu0 0.0
    %329 = vmatpush1.msra.mxu0 0.0
    %330 = vmatprep.subr.mxu0 0.0
    %331 = vmatpush1.msra.mxu0 0.0
    %332 = vmatprep.subr.mxu0 0.0
    %333 = vmatpush1.msra.mxu0 0.0
    %334 = vmatprep.subr.mxu0 0.0
    %335 = vmatpush1.msra.mxu0 0.0
    %336 = vmatprep.subr.mxu0 0.0
    %337 = vmatpush1.msra.mxu0 0.0
    %338 = vmatprep.subr.mxu0 0.0
    %339 = vmatpush1.msra.mxu0 0.0
    %340 = vmatprep.subr.mxu0 0.0
    %341 = vmatpush1.msra.mxu0 0.0
    %342 = vmatprep.subr.mxu0 0.0
    %343 = vmatpush1.msra.mxu0 0.0
    %344 = vmatprep.subr.mxu0 0.0
    %345 = vmatpush1.msra.mxu0 0.0
    %346 = vmatprep.subr.mxu0 0.0
    %347 = vmatpush1.msra.mxu0 0.0
    %348 = vmatprep.subr.mxu0 0.0
    %349 = vmatpush1.msra.mxu0 0.0
    %350 = vmatprep.subr.mxu0 0.0
    %351 = vmatpush1.msra.mxu0 0.0
    %352 = vmatprep.subr.mxu0 0.0
    %353 = vmatpush1.msra.mxu0 0.0
    %354 = vmatprep.subr.mxu0 0.0
    %355 = vmatpush1.msra.mxu0 0.0
    %356 = vmatprep.subr.mxu0 0.0
    %357 = vmatpush1.msra.mxu0 0.0
    %358 = vmatprep.subr.mxu0 0.0
    %359 = vmatpush1.msra.mxu0 0.0
    %360 = vmatprep.subr.mxu0 0.0
    %361 = vmatpush1.msra.mxu0 0.0
    %362 = vmatprep.subr.mxu0 0.0
    %363 = vmatpush1.msra.mxu0 0.0
    %364 = vmatprep.subr.mxu0 0.0
    %365 = vmatpush1.msra.mxu0 0.0
    %366 = vmatprep.subr.mxu0 0.0
    %367 = vmatpush1.msra.mxu0 0.0
    %368 = vmatprep.subr.mxu0 0.0
    %369 = vmatpush1.msra.mxu0 0.0
    %370 = vmatprep.subr.mxu0 0.0
    %371 = vmatpush1.msra.mxu0 0.0
    %372 = vmatprep.subr.mxu0 0.0
    %373 = vmatpush1.msra.mxu0 0.0
    %374 = vmatprep.subr.mxu0 0.0
    %375 = vmatpush1.msra.mxu0 0.0
    %376 = vmatprep.subr.mxu0 0.0
    %377 = vmatpush1.msra.mxu0 0.0
    %378 = vmatprep.mubr.f32.mxu0 0.0
    %379 = vmatmul.mubr.f32.gmra.mrb[0].mxu0 %v312
    %v380 = vpop.f32.mrb[0].mxu0
    %v381 = vadd.f32 %v308, %v380
    %v382 = vpop.f32.mrb[0].mxu0
    %383 = vdwg.mxu0
    %384 = vst [vmem:[#allocation2] sm:$0xff] %v381
    // Predicated region
    $region38: #{tpu_custom_call.1} parent=1 // pred_check
      _
    $region39: #{tpu_custom_call.1} parent=1 // pred_check_branch
      %386 = sbr.rel (0) target = $region41
    $region40: #{tpu_custom_call.1} parent=1 // pred_region
      %s388 = ssub.s32 128, 128
      %389 = vsyncadd [#allocation3], %s388
      %s391 = sshll.u32 [#allocation2], 4
      %s392 = int_to_ptr.vmem [resolvable:$true] %s391
      %394 = dma.vmem_to_hbm [thread:$0]  %s392, 128, %s9, [#allocation3]
    $region41: #{tpu_custom_call.1} parent=1 // pred_fallthru
      _
    // Predicated region
    $region42: #{tpu_custom_call.1} parent=1 // pred_check
      _
    $region43: #{tpu_custom_call.1} parent=1 // pred_check_branch
      %396 = sbr.rel (0) target = $region45
    $region44: #{tpu_custom_call.1} parent=1 // pred_region
      %397 = dma.done [#allocation3], 128
    $region45: #{tpu_custom_call.1} parent=1 // pred_fallthru
      _
    %398 = vsyncpa [#allocation3], 1

</llo_original>
